<compile_context>
chip_gen: v7x
topology: tpu7x:2x2x1
jax: 0.10.0
libtpu: 0.0.40
codegen_flags: <defaults>
</compile_context>

<pallas_src>
import functools

import jax
import jax.numpy as jnp
from jax import lax
from jax.experimental import pallas as pl
from jax.experimental.pallas import tpu as pltpu


def _round_up(x, m):
    return (x + m - 1) // m * m


def _stacked_lstm_kernel(max_len_ref,            # SMEM (nb,)  int32  per-tile max length
                         len_ref, emb_ref,       # VMEM (TB,1) int32 ; (L,TB,E)
                         w1i_ref, b1_ref, w1h_ref,
                         w2i_ref, w2h_ref, b2_ref,
                         wl_ref, bl_ref,
                         out_ref,                # (TB, 1)
                         gx_ref):                # scratch VMEM (L, TB, 4*H1) f32
    L, TB, E = emb_ref.shape
    H1 = w1h_ref.shape[0]
    H2 = w2h_ref.shape[0]

    # ---- hoisted layer-1 input projection: one fat MXU matmul over all steps ----
    x_all = emb_ref[...].reshape(L * TB, E)
    gx = jnp.dot(x_all, w1i_ref[...], preferred_element_type=jnp.float32) + b1_ref[...]
    gx_ref[...] = gx.reshape(L, TB, 4 * H1)

    lengths = len_ref[...]                      # (TB, 1) int32
    w1h = w1h_ref[...]
    w2i = w2i_ref[...]
    w2h = w2h_ref[...]
    b2 = b2_ref[...]

    def gate_split(gates, H):
        # PyTorch gate order: i, f, g, o.
        i = jax.nn.sigmoid(gates[:, 0 * H:1 * H])
        f = jax.nn.sigmoid(gates[:, 1 * H:2 * H])
        g = jnp.tanh(gates[:, 2 * H:3 * H])
        o = jax.nn.sigmoid(gates[:, 3 * H:4 * H])
        return i, f, g, o

    def step(t, carry):
        h1, c1, h2, c2 = carry
        valid = t < lengths                     # (TB, 1) bool
        m1 = jnp.broadcast_to(valid, (TB, H1))  # hoisted broadcasts (no CSE in JAX)
        m2 = jnp.broadcast_to(valid, (TB, H2))

        # Layer 1: only the recurrent dot is on the per-step critical path.
        g1 = gx_ref[t] + jnp.dot(h1, w1h, preferred_element_type=jnp.float32)
        i1, f1, gg1, o1 = gate_split(g1, H1)
        c1n = f1 * c1 + i1 * gg1
        h1n = o1 * jnp.tanh(c1n)
        h1 = jnp.where(m1, h1n, h1)
        c1 = jnp.where(m1, c1n, c1)

        # Layer 2 consumes layer-1's output at this step.
        g2 = (jnp.dot(h1, w2i, preferred_element_type=jnp.float32)
              + jnp.dot(h2, w2h, preferred_element_type=jnp.float32) + b2)
        i2, f2, gg2, o2 = gate_split(g2, H2)
        c2n = f2 * c2 + i2 * gg2
        h2n = o2 * jnp.tanh(c2n)
        h2 = jnp.where(m2, h2n, h2)
        c2 = jnp.where(m2, c2n, c2)
        return h1, c1, h2, c2

    init = (jnp.zeros((TB, H1), jnp.float32),
            jnp.zeros((TB, H1), jnp.float32),
            jnp.zeros((TB, H2), jnp.float32),
            jnp.zeros((TB, H2), jnp.float32))
    # Only iterate to this tile's longest valid sequence (packed-sequence skip).
    t_max = max_len_ref[pl.program_id(0)]
    _, _, h2, _ = lax.fori_loop(0, t_max, step, init)

    # classification_layer: Linear(H2 -> 1) as a lane reduction (VPU/XLU).
    y = jnp.sum(h2 * wl_ref[...], axis=-1, keepdims=True) + bl_ref[...]
    out_ref[...] = y.astype(out_ref.dtype)


def _pick_batch_tile(B, L, E, H1, H2, block_b, budget_bytes):
    """Largest batch tile <= block_b whose VMEM footprint fits the budget."""
    tb = min(block_b, _round_up(B, 8))
    tb = _round_up(tb, 8)

    def est(tb):
        emb_db = 2 * L * tb * E * 4                 # double-buffered embedding block
        gates = L * tb * 4 * H1 * 4                 # hoisted-projection scratch
        weights = 2 * 4 * (E * 4 * H1 + 4 * H1 + H1 * 4 * H1
                           + H1 * 4 * H2 + H2 * 4 * H2 + 4 * H2 + H2 + 1)
        state = 8 * tb * (H1 + H2) * 4              # loop carries / temporaries
        return emb_db + gates + weights + state + (2 << 20)

    while tb > 8 and est(tb) > budget_bytes:
        tb = max(8, _round_up(tb // 2, 8))
    return tb


def stacked_lstm_forward(token_ids, lengths, embedding_table,
                         w_ih1, w_hh1, b_ih1, b_hh1,
                         w_ih2, w_hh2, b_ih2, b_hh2,
                         lin_w, lin_b, *, block_b=128,
                         emb_dtype=jnp.float32):
    """token_ids: (B, L) int32, lengths: (B,) int32.  Returns (B, 1) float32.

    emb_dtype=jnp.bfloat16 halves the dominant HBM stream (MXU is bf16-native
    on all generations); default f32 keeps an exact match with the reference.
    """
    B, L = token_ids.shape
    V, E = embedding_table.shape
    H1 = w_hh1.shape[1]
    H2 = w_hh2.shape[1]
    assert w_ih1.shape == (4 * H1, E)
    assert w_ih2.shape == (4 * H2, H1)
    assert lin_w.shape == (1, H2)

    # Clamp lengths (PyTorch's pack_padded_sequence would raise for > L).
    lengths = jnp.minimum(lengths.astype(jnp.int32), L)

    # Frozen-embedding gather directly in time-major layout: (L, B, E).
    emb = jnp.take(embedding_table.astype(emb_dtype), token_ids.T, axis=0)

    # Batch tiling (VMEM-budgeted so the same code fits v7x's smaller VMEM).
    # NOTE(v7x): if B is large enough, prefer a tile giving >= 2 grid steps so
    # the "parallel" axis shards across both TensorCores.
    TB = _pick_batch_tile(B, L, E, H1, H2, block_b, budget_bytes=24 * 1024 * 1024)
    nb = pl.cdiv(B, TB)
    B_pad = nb * TB
    if B_pad != B:
        emb = jnp.pad(emb, ((0, 0), (0, B_pad - B), (0, 0)))
        lengths = jnp.pad(lengths, (0, B_pad - B))          # padded rows: length 0
    len2d = lengths.reshape(B_pad, 1)
    # Per-tile max valid length -> SMEM via scalar prefetch (dynamic loop bound).
    tile_max = jnp.max(lengths.reshape(nb, TB), axis=1).astype(jnp.int32)

    # Pre-transpose / fold parameters (torch gate order i, f, g, o preserved).
    w1i = w_ih1.T.astype(emb_dtype)                          # (E, 4*H1)  MXU operand
    w1h = w_hh1.T.astype(jnp.float32)                        # (H1, 4*H1)
    b1 = (b_ih1 + b_hh1).astype(jnp.float32).reshape(1, 4 * H1)
    w2i = w_ih2.T.astype(jnp.float32)                        # (H1, 4*H2)
    w2h = w_hh2.T.astype(jnp.float32)                        # (H2, 4*H2)
    b2 = (b_ih2 + b_hh2).astype(jnp.float32).reshape(1, 4 * H2)
    wl = lin_w.astype(jnp.float32)                           # (1, H2)
    bl = lin_b.astype(jnp.float32).reshape(1, 1)

    flops = 2 * B_pad * L * (E * 4 * H1 + H1 * 4 * H1 + H1 * 4 * H2 + H2 * 4 * H2)
    transcendentals = B_pad * L * 5 * (H1 + H2)
    bytes_accessed = int(emb.size * emb.dtype.itemsize) + 4 * (
        len2d.size + w1i.size + w1h.size + b1.size + w2i.size + w2h.size
        + b2.size + wl.size + bl.size + B_pad + nb)

    out = pl.pallas_call(
        _stacked_lstm_kernel,
        out_shape=jax.ShapeDtypeStruct((B_pad, 1), jnp.float32),
        grid_spec=pltpu.PrefetchScalarGridSpec(
            num_scalar_prefetch=1,                           # tile_max -> SMEM
            grid=(nb,),
            in_specs=[
                pl.BlockSpec((TB, 1), lambda b, m: (b, 0)),          # lengths
                pl.BlockSpec((L, TB, E), lambda b, m: (0, b, 0)),    # embeddings
                pl.BlockSpec((E, 4 * H1), lambda b, m: (0, 0)),      # W1_ih^T
                pl.BlockSpec((1, 4 * H1), lambda b, m: (0, 0)),      # b1
                pl.BlockSpec((H1, 4 * H1), lambda b, m: (0, 0)),     # W1_hh^T
                pl.BlockSpec((H1, 4 * H2), lambda b, m: (0, 0)),     # W2_ih^T
                pl.BlockSpec((H2, 4 * H2), lambda b, m: (0, 0)),     # W2_hh^T
                pl.BlockSpec((1, 4 * H2), lambda b, m: (0, 0)),      # b2
                pl.BlockSpec((1, H2), lambda b, m: (0, 0)),          # linear weight
                pl.BlockSpec((1, 1), lambda b, m: (0, 0)),           # linear bias
            ],
            out_specs=pl.BlockSpec((TB, 1), lambda b, m: (b, 0)),
            scratch_shapes=[pltpu.VMEM((L, TB, 4 * H1), jnp.float32)],
        ),
        compiler_params=pltpu.CompilerParams(
            dimension_semantics=("parallel",),
            vmem_limit_bytes=32 * 1024 * 1024),
        cost_estimate=pl.CostEstimate(
            flops=flops, transcendentals=transcendentals,
            bytes_accessed=bytes_accessed),
    )(tile_max, len2d, emb, w1i, b1, w1h, w2i, w2h, b2, wl, bl)

    return out[:B]


def _reference_forward(token_ids, lengths, embedding_table,
                       w_ih1, w_hh1, b_ih1, b_hh1,
                       w_ih2, w_hh2, b_ih2, b_hh2, lin_w, lin_b):
    """Pure-JAX reference matching the PyTorch packed stacked-LSTM forward."""
    emb = jnp.take(embedding_table, token_ids, axis=0)       # (B, L, E)
    B, L, _ = emb.shape
    H1 = w_hh1.shape[1]
    H2 = w_hh2.shape[1]

    def cell(x, h, c, w_ih, w_hh, b_ih, b_hh, H):
        gates = x @ w_ih.T + b_ih + h @ w_hh.T + b_hh
        i = jax.nn.sigmoid(gates[:, 0 * H:1 * H])
        f = jax.nn.sigmoid(gates[:, 1 * H:2 * H])
        g = jnp.tanh(gates[:, 2 * H:3 * H])
        o = jax.nn.sigmoid(gates[:, 3 * H:4 * H])
        c_new = f * c + i * g
        return o * jnp.tanh(c_new), c_new

    h1 = jnp.zeros((B, H1), jnp.float32)
    c1 = jnp.zeros((B, H1), jnp.float32)
    h2 = jnp.zeros((B, H2), jnp.float32)
    c2 = jnp.zeros((B, H2), jnp.float32)
    for t in range(L):
        m = (t < lengths)[:, None]
        h1n, c1n = cell(emb[:, t, :], h1, c1, w_ih1, w_hh1, b_ih1, b_hh1, H1)
        h1 = jnp.where(m, h1n, h1)
        c1 = jnp.where(m, c1n, c1)
        h2n, c2n = cell(h1, h2, c2, w_ih2, w_hh2, b_ih2, b_hh2, H2)
        h2 = jnp.where(m, h2n, h2)
        c2 = jnp.where(m, c2n, c2)
    return h2 @ lin_w.T + lin_b[None, :]


if __name__ == "__main__":
    # Small, deterministic synthetic setup consistent with the module.
    B, L = 2, 8          # batch, (padded) sequence length
    V, E = 16, 32        # vocab size, embedding dim
    H1, H2 = 64, 32      # LSTM hidden sizes

    key = jax.random.PRNGKey(0)
    keys = jax.random.split(key, 12)

    embedding_table = jax.random.normal(keys[0], (V, E), dtype=jnp.float32)
    token_ids = jax.random.randint(keys[1], (B, L), 0, V, dtype=jnp.int32)
    lengths = jnp.array([L, 5], dtype=jnp.int32)     # variable-length sequences

    def rnd(k, shape, scale=0.1):
        return scale * jax.random.normal(k, shape, dtype=jnp.float32)

    w_ih1 = rnd(keys[2], (4 * H1, E))
    w_hh1 = rnd(keys[3], (4 * H1, H1))
    b_ih1 = rnd(keys[4], (4 * H1,))
    b_hh1 = rnd(keys[5], (4 * H1,))
    w_ih2 = rnd(keys[6], (4 * H2, H1))
    w_hh2 = rnd(keys[7], (4 * H2, H2))
    b_ih2 = rnd(keys[8], (4 * H2,))
    b_hh2 = rnd(keys[9], (4 * H2,))
    lin_w = rnd(keys[10], (1, H2))
    lin_b = rnd(keys[11], (1,))

    out = stacked_lstm_forward(token_ids, lengths, embedding_table,
                               w_ih1, w_hh1, b_ih1, b_hh1,
                               w_ih2, w_hh2, b_ih2, b_hh2,
                               lin_w, lin_b)
    out = jax.block_until_ready(out)

    ref = _reference_forward(token_ids, lengths, embedding_table,
                             w_ih1, w_hh1, b_ih1, b_hh1,
                             w_ih2, w_hh2, b_ih2, b_hh2,
                             lin_w, lin_b)
    assert out.shape == (B, 1), out.shape
    assert jnp.allclose(out, ref, atol=1e-3, rtol=1e-3), (out, ref)

    print("KERNEL_OK")
</pallas_src>

<mosaic_0001>
module attributes {stable_mosaic.version = 11 : i64} {
  func.func @_stacked_lstm_kernel(%arg0: i32, %arg1: memref<1xi32, #tpu.memory_space<smem>>, %arg2: memref<8x1xi32, #tpu.memory_space<vmem>>, %arg3: memref<8x8x32xf32, #tpu.memory_space<vmem>>, %arg4: memref<32x256xf32, #tpu.memory_space<vmem>>, %arg5: memref<1x256xf32, #tpu.memory_space<vmem>>, %arg6: memref<64x256xf32, #tpu.memory_space<vmem>>, %arg7: memref<64x128xf32, #tpu.memory_space<vmem>>, %arg8: memref<32x128xf32, #tpu.memory_space<vmem>>, %arg9: memref<1x128xf32, #tpu.memory_space<vmem>>, %arg10: memref<1x32xf32, #tpu.memory_space<vmem>>, %arg11: memref<1x1xf32, #tpu.memory_space<vmem>>, %arg12: memref<8x1xf32, #tpu.memory_space<vmem>>, %arg13: memref<8x8x256xf32, #tpu.memory_space<vmem>>) attributes {dimension_semantics = [#tpu.dimension_semantics<parallel>], iteration_bounds = array<i64: 1>, scalar_prefetch = 1 : i64, scratch_operands = 1 : i64, tpu.core_type = #tpu.core_type<tc>, window_params = [{transform_indices = @transform_0, window_bounds = array<i64: 8, 1>}, {transform_indices = @transform_1, window_bounds = array<i64: 8, 8, 32>}, {pipeline_mode = #tpu.pipeline_mode<synchronous>, transform_indices = @transform_2, window_bounds = array<i64: 32, 256>}, {pipeline_mode = #tpu.pipeline_mode<synchronous>, transform_indices = @transform_3, window_bounds = array<i64: 1, 256>}, {pipeline_mode = #tpu.pipeline_mode<synchronous>, transform_indices = @transform_4, window_bounds = array<i64: 64, 256>}, {pipeline_mode = #tpu.pipeline_mode<synchronous>, transform_indices = @transform_5, window_bounds = array<i64: 64, 128>}, {pipeline_mode = #tpu.pipeline_mode<synchronous>, transform_indices = @transform_6, window_bounds = array<i64: 32, 128>}, {pipeline_mode = #tpu.pipeline_mode<synchronous>, transform_indices = @transform_7, window_bounds = array<i64: 1, 128>}, {pipeline_mode = #tpu.pipeline_mode<synchronous>, transform_indices = @transform_8, window_bounds = array<i64: 1, 32>}, {pipeline_mode = #tpu.pipeline_mode<synchronous>, transform_indices = @transform_9, window_bounds = array<i64: 1, 1>}, {transform_indices = @transform_10, window_bounds = array<i64: 8, 1>}]} {
    %c0 = arith.constant 0 : index
    %c0_0 = arith.constant 0 : index
    %c0_1 = arith.constant 0 : index
    %0 = vector.load %arg3[%c0, %c0_0, %c0_1] : memref<8x8x32xf32, #tpu.memory_space<vmem>>, vector<8x8x32xf32>
    %1 = vector.shape_cast %0 : vector<8x8x32xf32> to vector<64x32xf32>
    %c0_2 = arith.constant 0 : index
    %c0_3 = arith.constant 0 : index
    %2 = vector.load %arg4[%c0_2, %c0_3] : memref<32x256xf32, #tpu.memory_space<vmem>>, vector<32x256xf32>
    %cst = arith.constant dense<0.000000e+00> : vector<64x256xf32>
    %3 = tpu.matmul %1, %2, %cst {dimension_numbers = #tpu.dot_dimension_numbers<[1], [0], [0], [1], [0, 0, 1, 1], [], []>} : vector<64x32xf32>, vector<32x256xf32>, vector<64x256xf32> -> vector<64x256xf32>
    %c0_4 = arith.constant 0 : index
    %c0_5 = arith.constant 0 : index
    %4 = vector.load %arg5[%c0_4, %c0_5] : memref<1x256xf32, #tpu.memory_space<vmem>>, vector<1x256xf32>
    %5 = vector.broadcast %4 : vector<1x256xf32> to vector<64x256xf32>
    %6 = arith.addf %3, %5 : vector<64x256xf32>
    %7 = vector.shape_cast %6 : vector<64x256xf32> to vector<8x8x256xf32>
    %c0_6 = arith.constant 0 : index
    %c0_7 = arith.constant 0 : index
    %c0_8 = arith.constant 0 : index
    %8 = vector.load %arg13[%c0_6, %c0_7, %c0_8] : memref<8x8x256xf32, #tpu.memory_space<vmem>>, vector<8x8x256xf32>
    tpu.vector_store %arg13[%c0_6, %c0_7, %c0_8], %7 {strides = array<i32>} : memref<8x8x256xf32, #tpu.memory_space<vmem>>, vector<8x8x256xf32>,
    %c0_9 = arith.constant 0 : index
    %c0_10 = arith.constant 0 : index
    %9 = vector.load %arg2[%c0_9, %c0_10] : memref<8x1xi32, #tpu.memory_space<vmem>>, vector<8x1xi32>
    %c0_11 = arith.constant 0 : index
    %c0_12 = arith.constant 0 : index
    %10 = vector.load %arg6[%c0_11, %c0_12] : memref<64x256xf32, #tpu.memory_space<vmem>>, vector<64x256xf32>
    %c0_13 = arith.constant 0 : index
    %c0_14 = arith.constant 0 : index
    %11 = vector.load %arg7[%c0_13, %c0_14] : memref<64x128xf32, #tpu.memory_space<vmem>>, vector<64x128xf32>
    %c0_15 = arith.constant 0 : index
    %c0_16 = arith.constant 0 : index
    %12 = vector.load %arg8[%c0_15, %c0_16] : memref<32x128xf32, #tpu.memory_space<vmem>>, vector<32x128xf32>
    %c0_17 = arith.constant 0 : index
    %c0_18 = arith.constant 0 : index
    %13 = vector.load %arg9[%c0_17, %c0_18] : memref<1x128xf32, #tpu.memory_space<vmem>>, vector<1x128xf32>
    %cst_19 = arith.constant 0.000000e+00 : f32
    %14 = vector.broadcast %cst_19 : f32 to vector<8x64xf32>
    %cst_20 = arith.constant 0.000000e+00 : f32
    %15 = vector.broadcast %cst_20 : f32 to vector<8x64xf32>
    %cst_21 = arith.constant 0.000000e+00 : f32
    %16 = vector.broadcast %cst_21 : f32 to vector<8x32xf32>
    %cst_22 = arith.constant 0.000000e+00 : f32
    %17 = vector.broadcast %cst_22 : f32 to vector<8x32xf32>
    %18 = arith.index_cast %arg0 : i32 to index
    %19 = memref.load %arg1[%18] : memref<1xi32, #tpu.memory_space<smem>>
    %c0_i32 = arith.constant 0 : i32
    %20 = arith.subi %19, %c0_i32 : i32
    %21 = arith.addi %c0_i32, %20 : i32
    %c1_i32 = arith.constant 1 : i32
    %22:4 = scf.for %arg14 = %c0_i32 to %21 step %c1_i32 iter_args(%arg15 = %14, %arg16 = %15, %arg17 = %16, %arg18 = %17) -> (vector<8x64xf32>, vector<8x64xf32>, vector<8x32xf32>, vector<8x32xf32>)  : i32 {
      %32 = vector.broadcast %arg14 : i32 to vector<8x1xi32>
      %33 = arith.cmpi slt, %32, %9 : vector<8x1xi32>
      %34 = vector.shape_cast %33 : vector<8x1xi1> to vector<8x1xi1>
      %35 = vector.broadcast %34 : vector<8x1xi1> to vector<8x64xi1>
      %36 = vector.shape_cast %33 : vector<8x1xi1> to vector<8x1xi1>
      %37 = vector.broadcast %36 : vector<8x1xi1> to vector<8x32xi1>
      %38 = arith.index_cast %arg14 : i32 to index
      %c0_30 = arith.constant 0 : index
      %c0_31 = arith.constant 0 : index
      %39 = vector.load %arg13[%38, %c0_30, %c0_31] : memref<8x8x256xf32, #tpu.memory_space<vmem>>, vector<1x8x256xf32>
      %40 = vector.shape_cast %39 : vector<1x8x256xf32> to vector<8x256xf32>
      %cst_32 = arith.constant dense<0.000000e+00> : vector<8x256xf32>
      %41 = tpu.matmul %arg15, %10, %cst_32 {dimension_numbers = #tpu.dot_dimension_numbers<[1], [0], [0], [1], [0, 0, 1, 1], [], []>} : vector<8x64xf32>, vector<64x256xf32>, vector<8x256xf32> -> vector<8x256xf32>
      %42 = arith.addf %40, %41 : vector<8x256xf32>
      %43 = vector.extract_strided_slice %42 {offsets = [0, 0], sizes = [8, 64], strides = [1, 1]} : vector<8x256xf32> to vector<8x64xf32>
      %44 = arith.negf %43 : vector<8x64xf32>
      %45 = math.exp %44 : vector<8x64xf32>
      %cst_33 = arith.constant 1.000000e+00 : f32
      %46 = vector.broadcast %cst_33 : f32 to vector<8x64xf32>
      %47 = arith.addf %46, %45 : vector<8x64xf32>
      %48 = arith.divf %46, %47 : vector<8x64xf32>
      %49 = vector.extract_strided_slice %42 {offsets = [0, 64], sizes = [8, 64], strides = [1, 1]} : vector<8x256xf32> to vector<8x64xf32>
      %50 = arith.negf %49 : vector<8x64xf32>
      %51 = math.exp %50 : vector<8x64xf32>
      %cst_34 = arith.constant 1.000000e+00 : f32
      %52 = vector.broadcast %cst_34 : f32 to vector<8x64xf32>
      %53 = arith.addf %52, %51 : vector<8x64xf32>
      %54 = arith.divf %52, %53 : vector<8x64xf32>
      %55 = vector.extract_strided_slice %42 {offsets = [0, 128], sizes = [8, 64], strides = [1, 1]} : vector<8x256xf32> to vector<8x64xf32>
      %56 = math.tanh %55 : vector<8x64xf32>
      %57 = vector.extract_strided_slice %42 {offsets = [0, 192], sizes = [8, 64], strides = [1, 1]} : vector<8x256xf32> to vector<8x64xf32>
      %58 = arith.negf %57 : vector<8x64xf32>
      %59 = math.exp %58 : vector<8x64xf32>
      %cst_35 = arith.constant 1.000000e+00 : f32
      %60 = vector.broadcast %cst_35 : f32 to vector<8x64xf32>
      %61 = arith.addf %60, %59 : vector<8x64xf32>
      %62 = arith.divf %60, %61 : vector<8x64xf32>
      %63 = arith.mulf %54, %arg16 : vector<8x64xf32>
      %64 = arith.mulf %48, %56 : vector<8x64xf32>
      %65 = arith.addf %63, %64 : vector<8x64xf32>
      %66 = math.tanh %65 : vector<8x64xf32>
      %67 = arith.mulf %62, %66 : vector<8x64xf32>
      %68 = arith.select %35, %67, %arg15 : vector<8x64xi1>, vector<8x64xf32>
      %69 = arith.select %35, %65, %arg16 : vector<8x64xi1>, vector<8x64xf32>
      %cst_36 = arith.constant dense<0.000000e+00> : vector<8x128xf32>
      %70 = tpu.matmul %68, %11, %cst_36 {dimension_numbers = #tpu.dot_dimension_numbers<[1], [0], [0], [1], [0, 0, 1, 1], [], []>} : vector<8x64xf32>, vector<64x128xf32>, vector<8x128xf32> -> vector<8x128xf32>
      %cst_37 = arith.constant dense<0.000000e+00> : vector<8x128xf32>
      %71 = tpu.matmul %arg17, %12, %cst_37 {dimension_numbers = #tpu.dot_dimension_numbers<[1], [0], [0], [1], [0, 0, 1, 1], [], []>} : vector<8x32xf32>, vector<32x128xf32>, vector<8x128xf32> -> vector<8x128xf32>
      %72 = arith.addf %70, %71 : vector<8x128xf32>
      %73 = vector.broadcast %13 : vector<1x128xf32> to vector<8x128xf32>
      %74 = arith.addf %72, %73 : vector<8x128xf32>
      %75 = vector.extract_strided_slice %74 {offsets = [0, 0], sizes = [8, 32], strides = [1, 1]} : vector<8x128xf32> to vector<8x32xf32>
      %76 = arith.negf %75 : vector<8x32xf32>
      %77 = math.exp %76 : vector<8x32xf32>
      %cst_38 = arith.constant 1.000000e+00 : f32
      %78 = vector.broadcast %cst_38 : f32 to vector<8x32xf32>
      %79 = arith.addf %78, %77 : vector<8x32xf32>
      %80 = arith.divf %78, %79 : vector<8x32xf32>
      %81 = vector.extract_strided_slice %74 {offsets = [0, 32], sizes = [8, 32], strides = [1, 1]} : vector<8x128xf32> to vector<8x32xf32>
      %82 = arith.negf %81 : vector<8x32xf32>
      %83 = math.exp %82 : vector<8x32xf32>
      %cst_39 = arith.constant 1.000000e+00 : f32
      %84 = vector.broadcast %cst_39 : f32 to vector<8x32xf32>
      %85 = arith.addf %84, %83 : vector<8x32xf32>
      %86 = arith.divf %84, %85 : vector<8x32xf32>
      %87 = vector.extract_strided_slice %74 {offsets = [0, 64], sizes = [8, 32], strides = [1, 1]} : vector<8x128xf32> to vector<8x32xf32>
      %88 = math.tanh %87 : vector<8x32xf32>
      %89 = vector.extract_strided_slice %74 {offsets = [0, 96], sizes = [8, 32], strides = [1, 1]} : vector<8x128xf32> to vector<8x32xf32>
      %90 = arith.negf %89 : vector<8x32xf32>
      %91 = math.exp %90 : vector<8x32xf32>
      %cst_40 = arith.constant 1.000000e+00 : f32
      %92 = vector.broadcast %cst_40 : f32 to vector<8x32xf32>
      %93 = arith.addf %92, %91 : vector<8x32xf32>
      %94 = arith.divf %92, %93 : vector<8x32xf32>
      %95 = arith.mulf %86, %arg18 : vector<8x32xf32>
      %96 = arith.mulf %80, %88 : vector<8x32xf32>
      %97 = arith.addf %95, %96 : vector<8x32xf32>
      %98 = math.tanh %97 : vector<8x32xf32>
      %99 = arith.mulf %94, %98 : vector<8x32xf32>
      %100 = arith.select %37, %99, %arg17 : vector<8x32xi1>, vector<8x32xf32>
      %101 = arith.select %37, %97, %arg18 : vector<8x32xi1>, vector<8x32xf32>
      scf.yield %68, %69, %100, %101 : vector<8x64xf32>, vector<8x64xf32>, vector<8x32xf32>, vector<8x32xf32>
    }
    %c0_23 = arith.constant 0 : index
    %c0_24 = arith.constant 0 : index
    %23 = vector.load %arg10[%c0_23, %c0_24] : memref<1x32xf32, #tpu.memory_space<vmem>>, vector<1x32xf32>
    %24 = vector.broadcast %23 : vector<1x32xf32> to vector<8x32xf32>
    %25 = arith.mulf %22#2, %24 : vector<8x32xf32>
    %cst_25 = arith.constant dense<0.000000e+00> : vector<8xf32>
    %26 = vector.multi_reduction <add>, %25, %cst_25 [1] : vector<8x32xf32> to vector<8xf32>
    %27 = vector.shape_cast %26 : vector<8xf32> to vector<8x1xf32>
    %c0_26 = arith.constant 0 : index
    %c0_27 = arith.constant 0 : index
    %28 = vector.load %arg11[%c0_26, %c0_27] : memref<1x1xf32, #tpu.memory_space<vmem>>, vector<1x1xf32>
    %29 = vector.broadcast %28 : vector<1x1xf32> to vector<8x1xf32>
    %30 = arith.addf %27, %29 : vector<8x1xf32>
    %c0_28 = arith.constant 0 : index
    %c0_29 = arith.constant 0 : index
    %31 = vector.load %arg12[%c0_28, %c0_29] : memref<8x1xf32, #tpu.memory_space<vmem>>, vector<8x1xf32>
    tpu.vector_store %arg12[%c0_28, %c0_29], %30 {strides = array<i32>} : memref<8x1xf32, #tpu.memory_space<vmem>>, vector<8x1xf32>,
    return
  }
  func.func @transform_0(%arg0: i32, %arg1: memref<1xi32, #tpu.memory_space<smem>>) -> (i32, i32) {
    %c0_i32 = arith.constant 0 : i32
    %c0_i32_0 = arith.constant 0 : i32
    return %arg0, %c0_i32 : i32, i32
  }
  func.func @transform_1(%arg0: i32, %arg1: memref<1xi32, #tpu.memory_space<smem>>) -> (i32, i32, i32) {
    %c0_i32 = arith.constant 0 : i32
    %c0_i32_0 = arith.constant 0 : i32
    %c0_i32_1 = arith.constant 0 : i32
    return %c0_i32, %arg0, %c0_i32_0 : i32, i32, i32
  }
  func.func @transform_2(%arg0: i32, %arg1: memref<1xi32, #tpu.memory_space<smem>>) -> (i32, i32) {
    %c0_i32 = arith.constant 0 : i32
    %c0_i32_0 = arith.constant 0 : i32
    %c0_i32_1 = arith.constant 0 : i32
    return %c0_i32, %c0_i32_0 : i32, i32
  }
  func.func @transform_3(%arg0: i32, %arg1: memref<1xi32, #tpu.memory_space<smem>>) -> (i32, i32) {
    %c0_i32 = arith.constant 0 : i32
    %c0_i32_0 = arith.constant 0 : i32
    %c0_i32_1 = arith.constant 0 : i32
    return %c0_i32, %c0_i32_0 : i32, i32
  }
  func.func @transform_4(%arg0: i32, %arg1: memref<1xi32, #tpu.memory_space<smem>>) -> (i32, i32) {
    %c0_i32 = arith.constant 0 : i32
    %c0_i32_0 = arith.constant 0 : i32
    %c0_i32_1 = arith.constant 0 : i32
    return %c0_i32, %c0_i32_0 : i32, i32
  }
  func.func @transform_5(%arg0: i32, %arg1: memref<1xi32, #tpu.memory_space<smem>>) -> (i32, i32) {
    %c0_i32 = arith.constant 0 : i32
    %c0_i32_0 = arith.constant 0 : i32
    %c0_i32_1 = arith.constant 0 : i32
    return %c0_i32, %c0_i32_0 : i32, i32
  }
  func.func @transform_6(%arg0: i32, %arg1: memref<1xi32, #tpu.memory_space<smem>>) -> (i32, i32) {
    %c0_i32 = arith.constant 0 : i32
    %c0_i32_0 = arith.constant 0 : i32
    %c0_i32_1 = arith.constant 0 : i32
    return %c0_i32, %c0_i32_0 : i32, i32
  }
  func.func @transform_7(%arg0: i32, %arg1: memref<1xi32, #tpu.memory_space<smem>>) -> (i32, i32) {
    %c0_i32 = arith.constant 0 : i32
    %c0_i32_0 = arith.constant 0 : i32
    %c0_i32_1 = arith.constant 0 : i32
    return %c0_i32, %c0_i32_0 : i32, i32
  }
  func.func @transform_8(%arg0: i32, %arg1: memref<1xi32, #tpu.memory_space<smem>>) -> (i32, i32) {
    %c0_i32 = arith.constant 0 : i32
    %c0_i32_0 = arith.constant 0 : i32
    %c0_i32_1 = arith.constant 0 : i32
    return %c0_i32, %c0_i32_0 : i32, i32
  }
  func.func @transform_9(%arg0: i32, %arg1: memref<1xi32, #tpu.memory_space<smem>>) -> (i32, i32) {
    %c0_i32 = arith.constant 0 : i32
    %c0_i32_0 = arith.constant 0 : i32
    %c0_i32_1 = arith.constant 0 : i32
    return %c0_i32, %c0_i32_0 : i32, i32
  }
  func.func @transform_10(%arg0: i32, %arg1: memref<1xi32, #tpu.memory_space<smem>>) -> (i32, i32) {
    %c0_i32 = arith.constant 0 : i32
    %c0_i32_0 = arith.constant 0 : i32
    return %arg0, %c0_i32 : i32, i32
  }
}

</mosaic_0001>

<llo_original>
// kernel: tpu_custom_call.1
$region0: #{tpu_custom_call.1}
  #allocation0 [shape = 'u32[]', space=smem, size = 0x4, offset = 0x4, fixed_abs, tag = 'smem constant byte address 0x4 - core index']
  #allocation1 [shape = 'u32[144,128]{1,0:T(1,128)}', space=vmem, size = 0x12000, scoped, tag = 'internal scratch']
  #allocation2 [shape = 'f32[8,8,256]{2,1,0:T(8,128)}', space=vmem, size = 0x10000, scoped, tag = 'scratch operand']
  #allocation3 [shape = 's32[1]{0}', space=sflag, size = 0x4, scoped, tag = 'scoped memory for tpu_custom_call.1']
  #allocation4 [shape = 's32[1]{0:T(128)S(6)}', space=smem, size = 0x200, scoped, tag = 'prefetched SMEM operand 0']
  #allocation5 [shape = 'f32[1,1]{1,0:T(1,128)S(1)}', space=vmem, size = 0x200, scoped, tag = 'scoped memory for tpu_custom_call.1']
  %s0 = inlined_call_operand.<no memory space> [shape: s32[1], index: 0, kind: input, shape index: {}]
  %s1 = inlined_call_operand.vmem [shape: s32[8,1], index: 1, kind: input, shape index: {}]
  %s2 = inlined_call_operand.hbm [shape: f32[8,8,32], index: 2, kind: input, shape index: {}]
  %s3 = inlined_call_operand.hbm [shape: f32[32,256], index: 3, kind: input, shape index: {}]
  %s4 = inlined_call_operand.vmem [shape: f32[1,256], index: 4, kind: input, shape index: {}]
  %s5 = inlined_call_operand.hbm [shape: f32[64,256], index: 5, kind: input, shape index: {}]
  %s6 = inlined_call_operand.hbm [shape: f32[64,128], index: 6, kind: input, shape index: {}]
  %s7 = inlined_call_operand.vmem [shape: f32[32,128], index: 7, kind: input, shape index: {}]
  %s8 = inlined_call_operand.vmem [shape: f32[1,128], index: 8, kind: input, shape index: {}]
  %s9 = inlined_call_operand.vmem [shape: f32[1,32], index: 9, kind: input, shape index: {}]
  %s10 = inlined_call_operand.<no memory space> [shape: f32[1,1], index: 10, kind: input, shape index: {}]
  %s11 = inlined_call_operand.vmem [shape: f32[8,1], index: 11, kind: output, shape index: {}]
  %s12 = sld [smem:[#allocation0]]
  $region73: #{tpu_custom_call.1} parent=0
    _
  %s14 = ssub.s32 1, %s12
  %s15 = scalar_select 0, %s14, %s12
  %16 = sst [smem:[#allocation4]] %s0
  %v17 = vstv %s10
  %18 = vst [vmem:[#allocation5] sm:$0x1] %v17
  $region1: #{tpu_custom_call.1} parent=0
    #allocation6 [shape = 'u8[32768]{0}', space=vmem, size = 0x8000, scoped, tag = 'input window, operand 2, single buffered']
    #allocation7 [shape = 's32[1]{0}', space=sflag, size = 0x4, scoped, tag = 'scoped memory for tpu_custom_call.1']
    #allocation8 [shape = 'u8[32768]{0}', space=vmem, size = 0x8000, scoped, tag = 'input window, operand 3, single buffered']
    #allocation9 [shape = 's32[1]{0}', space=sflag, size = 0x4, scoped, tag = 'scoped memory for tpu_custom_call.1']
    #allocation10 [shape = 'u8[65536]{0}', space=vmem, size = 0x10000, scoped, tag = 'input window, operand 5, single buffered']
    #allocation11 [shape = 'u8[32768]{0}', space=vmem, size = 0x8000, scoped, tag = 'input window, operand 6, single buffered']
    #allocation12 [shape = 's32[1]{0}', space=sflag, size = 0x4, scoped, tag = 'scoped memory for tpu_custom_call.1']
    %19 = vsyncpa [#allocation7], 0
    %20 = vsyncpa [#allocation9], 0
    %21 = vsyncpa [#allocation12], 0
    // Predicated region
    $region2: #{tpu_custom_call.1} parent=1 // pred_check
      _
    $region3: #{tpu_custom_call.1} parent=1 // pred_check_branch
      %23 = sbr.rel (0) target = $region5
    $region4: #{tpu_custom_call.1} parent=1 // pred_region
      _
    $region5: #{tpu_custom_call.1} parent=1 // pred_fallthru
      _
    // Predicated region
    $region6: #{tpu_custom_call.1} parent=1 // pred_check
      _
    $region7: #{tpu_custom_call.1} parent=1 // pred_check_branch
      %25 = sbr.rel (0) target = $region9
    $region8: #{tpu_custom_call.1} parent=1 // pred_region
      %s27 = ssub.s32 1024, 1024
      %28 = vsyncadd [#allocation7], %s27
      %s29 = sshll.u32 [#allocation6], 4
      %s30 = int_to_ptr.vmem [resolvable:$true] %s29
      %35 = dma.hbm_to_vmem [thread:$0]  %s2, 1024, %s30, [#allocation7], 128, 128, 8
    $region9: #{tpu_custom_call.1} parent=1 // pred_fallthru
      _
    // Predicated region
    $region10: #{tpu_custom_call.1} parent=1 // pred_check
      _
    $region11: #{tpu_custom_call.1} parent=1 // pred_check_branch
      %37 = sbr.rel (0) target = $region13
    $region12: #{tpu_custom_call.1} parent=1 // pred_region
      %s39 = ssub.s32 1024, 1024
      %40 = vsyncadd [#allocation9], %s39
      %s41 = sshll.u32 [#allocation8], 4
      %s42 = int_to_ptr.vmem [resolvable:$true] %s41
      %47 = dma.hbm_to_vmem [thread:$0]  %s3, 1024, %s42, [#allocation9], 256, 256, 16
    $region13: #{tpu_custom_call.1} parent=1 // pred_fallthru
      _
    // Predicated region
    $region14: #{tpu_custom_call.1} parent=1 // pred_check
      _
    $region15: #{tpu_custom_call.1} parent=1 // pred_check_branch
      %49 = sbr.rel (0) target = $region17
    $region16: #{tpu_custom_call.1} parent=1 // pred_region
      _
    $region17: #{tpu_custom_call.1} parent=1 // pred_fallthru
      _
    // Predicated region
    $region18: #{tpu_custom_call.1} parent=1 // pred_check
      _
    $region19: #{tpu_custom_call.1} parent=1 // pred_check_branch
      %51 = sbr.rel (0) target = $region21
    $region20: #{tpu_custom_call.1} parent=1 // pred_region
      %s53 = ssub.s32 2048, 2048
      %54 = vsyncadd [#allocation9], %s53
      %s55 = sshll.u32 [#allocation10], 4
      %s56 = int_to_ptr.vmem [resolvable:$true] %s55
      %61 = dma.hbm_to_vmem [thread:$0]  %s5, 2048, %s56, [#allocation9], 256, 256, 16
    $region21: #{tpu_custom_call.1} parent=1 // pred_fallthru
      _
    // Predicated region
    $region22: #{tpu_custom_call.1} parent=1 // pred_check
      _
    $region23: #{tpu_custom_call.1} parent=1 // pred_check_branch
      %63 = sbr.rel (0) target = $region25
    $region24: #{tpu_custom_call.1} parent=1 // pred_region
      %s65 = ssub.s32 1024, 1024
      %66 = vsyncadd [#allocation12], %s65
      %s67 = sshll.u32 [#allocation11], 4
      %s68 = int_to_ptr.vmem [resolvable:$true] %s67
      %73 = dma.hbm_to_vmem [thread:$0]  %s6, 1024, %s68, [#allocation12], 128, 128, 8
    $region25: #{tpu_custom_call.1} parent=1 // pred_fallthru
      _
    // Predicated region
    $region26: #{tpu_custom_call.1} parent=1 // pred_check
      _
    $region27: #{tpu_custom_call.1} parent=1 // pred_check_branch
      %75 = sbr.rel (0) target = $region29
    $region28: #{tpu_custom_call.1} parent=1 // pred_region
      _
    $region29: #{tpu_custom_call.1} parent=1 // pred_fallthru
      _
    // Predicated region
    $region30: #{tpu_custom_call.1} parent=1 // pred_check
      _
    $region31: #{tpu_custom_call.1} parent=1 // pred_check_branch
      %77 = sbr.rel (0) target = $region33
    $region32: #{tpu_custom_call.1} parent=1 // pred_region
      _
    $region33: #{tpu_custom_call.1} parent=1 // pred_fallthru
      _
    // Predicated region
    $region34: #{tpu_custom_call.1} parent=1 // pred_check
      _
    $region35: #{tpu_custom_call.1} parent=1 // pred_check_branch
      %79 = sbr.rel (0) target = $region37
    $region36: #{tpu_custom_call.1} parent=1 // pred_region
      _
    $region37: #{tpu_custom_call.1} parent=1 // pred_fallthru
      _
    // Predicated region
    $region38: #{tpu_custom_call.1} parent=1 // pred_check
      _
    $region39: #{tpu_custom_call.1} parent=1 // pred_check_branch
      %81 = sbr.rel (0) target = $region41
    $region40: #{tpu_custom_call.1} parent=1 // pred_region
      _
    $region41: #{tpu_custom_call.1} parent=1 // pred_fallthru
      _
    // Predicated region
    $region42: #{tpu_custom_call.1} parent=1 // pred_check
      _
    $region43: #{tpu_custom_call.1} parent=1 // pred_check_branch
      %83 = sbr.rel (0) target = $region45
    $region44: #{tpu_custom_call.1} parent=1 // pred_region
      %84 = dma.done [#allocation7], 1024
    $region45: #{tpu_custom_call.1} parent=1 // pred_fallthru
      _
    // Predicated region
    $region46: #{tpu_custom_call.1} parent=1 // pred_check
      _
    $region47: #{tpu_custom_call.1} parent=1 // pred_check_branch
      %86 = sbr.rel (0) target = $region49
    $region48: #{tpu_custom_call.1} parent=1 // pred_region
      %87 = dma.done [#allocation9], 1024
    $region49: #{tpu_custom_call.1} parent=1 // pred_fallthru
      _
    // Predicated region
    $region50: #{tpu_custom_call.1} parent=1 // pred_check
      _
    $region51: #{tpu_custom_call.1} parent=1 // pred_check_branch
      %89 = sbr.rel (0) target = $region53
    $region52: #{tpu_custom_call.1} parent=1 // pred_region
      %90 = dma.done [#allocation9], 2048
    $region53: #{tpu_custom_call.1} parent=1 // pred_fallthru
      _
    // Predicated region
    $region54: #{tpu_custom_call.1} parent=1 // pred_check
      _
    $region55: #{tpu_custom_call.1} parent=1 // pred_check_branch
      %92 = sbr.rel (0) target = $region57
    $region56: #{tpu_custom_call.1} parent=1 // pred_region
      %93 = dma.done [#allocation12], 1024
    $region57: #{tpu_custom_call.1} parent=1 // pred_fallthru
      _
    %v94 = vld [vmem:[#allocation6] sm:$0xff]
    %v95 = vld [vmem:[#allocation6 + $0x8] sm:$0xff]
    %v96 = vld [vmem:[#allocation6 + $0x10] sm:$0xff]
    %v97 = vld [vmem:[#allocation6 + $0x18] sm:$0xff]
    %v98 = vld [vmem:[#allocation6 + $0x20] sm:$0xff]
    %v99 = vld [vmem:[#allocation6 + $0x28] sm:$0xff]
    %v100 = vld [vmem:[#allocation6 + $0x30] sm:$0xff]
    %v101 = vld [vmem:[#allocation6 + $0x38] sm:$0xff]
    %v102 = vld [vmem:[#allocation8] sm:$0xff]
    %v103 = vld [vmem:[#allocation8 + $0x8] sm:$0xff]
    %v104 = vld [vmem:[#allocation8 + $0x10] sm:$0xff]
    %v105 = vld [vmem:[#allocation8 + $0x18] sm:$0xff]
    %v106 = vld [vmem:[#allocation8 + $0x20] sm:$0xff]
    %v107 = vld [vmem:[#allocation8 + $0x28] sm:$0xff]
    %v108 = vld [vmem:[#allocation8 + $0x30] sm:$0xff]
    %v109 = vld [vmem:[#allocation8 + $0x38] sm:$0xff]
    %v110 = vld [vmem:[%s4] sm:$0x3]
    %v112 = vlaneseq
    %v113 = vshrl.u32 %v112, 7
    %v114 = vsub.s32 0, %v113
    %v115 = vrot.slane %v110, %v114
    %v116 = vlaneseq
    %v117 = vshrl.u32 %v116, 7
    %v118 = vsub.s32 1, %v117
    %v119 = vrot.slane %v110, %v118
    %vm122 = vcmask 261120
    %v124 = vsel %vm122, %v94, 0
    %v127 = vsel %vm122, %v95, 0
    %v130 = vsel %vm122, %v96, 0
    %v133 = vsel %vm122, %v97, 0
    %v136 = vsel %vm122, %v98, 0
    %v139 = vsel %vm122, %v99, 0
    %v142 = vsel %vm122, %v100, 0
    %v145 = vsel %vm122, %v101, 0
    %147 = vmatprep.subr.mxu0 %v103
    %148 = vmatpush1.msra.mxu0 %v102
    %149 = vmatprep.subr.mxu0 %v105
    %150 = vmatpush1.msra.mxu0 %v104
    %151 = vmatprep.subr.mxu0 %v107
    %152 = vmatpush1.msra.mxu0 %v106
    %153 = vmatprep.subr.mxu0 %v109
    %154 = vmatpush1.msra.mxu0 %v108
    %155 = vmatprep.subr.mxu0 0.0
    %156 = vmatpush1.msra.mxu0 0.0
    %157 = vmatprep.subr.mxu0 0.0
    %158 = vmatpush1.msra.mxu0 0.0
    %159 = vmatprep.subr.mxu0 0.0
    %160 = vmatpush1.msra.mxu0 0.0
    %161 = vmatprep.subr.mxu0 0.0
    %162 = vmatpush1.msra.mxu0 0.0
    %163 = vmatprep.subr.mxu0 0.0
    %164 = vmatpush1.msra.mxu0 0.0
    %165 = vmatprep.subr.mxu0 0.0
    %166 = vmatpush1.msra.mxu0 0.0
    %167 = vmatprep.subr.mxu0 0.0
    %168 = vmatpush1.msra.mxu0 0.0
    %169 = vmatprep.subr.mxu0 0.0
    %170 = vmatpush1.msra.mxu0 0.0
    %171 = vmatprep.subr.mxu0 0.0
    %172 = vmatpush1.msra.mxu0 0.0
    %173 = vmatprep.subr.mxu0 0.0
    %174 = vmatpush1.msra.mxu0 0.0
    %175 = vmatprep.subr.mxu0 0.0
    %176 = vmatpush1.msra.mxu0 0.0
    %177 = vmatprep.subr.mxu0 0.0
    %178 = vmatpush1.msra.mxu0 0.0
    %179 = vmatprep.subr.mxu0 0.0
    %180 = vmatpush1.msra.mxu0 0.0
    %181 = vmatprep.subr.mxu0 0.0
    %182 = vmatpush1.msra.mxu0 0.0
    %183 = vmatprep.subr.mxu0 0.0
    %184 = vmatpush1.msra.mxu0 0.0
    %185 = vmatprep.subr.mxu0 0.0
    %186 = vmatpush1.msra.mxu0 0.0
    %187 = vmatprep.subr.mxu0 0.0
    %188 = vmatpush1.msra.mxu0 0.0
    %189 = vmatprep.subr.mxu0 0.0
    %190 = vmatpush1.msra.mxu0 0.0
    %191 = vmatprep.subr.mxu0 0.0
    %192 = vmatpush1.msra.mxu0 0.0
    %193 = vmatprep.subr.mxu0 0.0
    %194 = vmatpush1.msra.mxu0 0.0
    %195 = vmatprep.subr.mxu0 0.0
    %196 = vmatpush1.msra.mxu0 0.0
    %197 = vmatprep.subr.mxu0 0.0
    %198 = vmatpush1.msra.mxu0 0.0
    %199 = vmatprep.subr.mxu0 0.0
    %200 = vmatpush1.msra.mxu0 0.0
    %201 = vmatprep.subr.mxu0 0.0
    %202 = vmatpush1.msra.mxu0 0.0
    %203 = vmatprep.subr.mxu0 0.0
    %204 = vmatpush1.msra.mxu0 0.0
    %205 = vmatprep.subr.mxu0 0.0
    %206 = vmatpush1.msra.mxu0 0.0
    %207 = vmatprep.subr.mxu0 0.0
    %208 = vmatpush1.msra.mxu0 0.0
    %209 = vmatprep.subr.mxu0 0.0
    %210 = vmatpush1.msra.mxu0 0.0
    %211 = vmatprep.mubr.f32.mxu0 0.0
    %212 = vmatmul.mubr.f32.gmra.mrb[0].mxu0 %v124
    %v213 = vpop.f32.mrb[0].mxu0
    %v214 = vadd.f32 %v115, %v213
    %v215 = vpop.f32.mrb[0].mxu0
    %v216 = vadd.f32 %v119, %v215
    %217 = vmatprep.mubr.f32.mxu0 0.0
    %218 = vmatmul.mubr.f32.gmra.mrb[0].mxu0 %v127
    %v219 = vpop.f32.mrb[0].mxu0
    %v220 = vadd.f32 %v115, %v219
    %v221 = vpop.f32.mrb[0].mxu0
    %v222 = vadd.f32 %v119, %v221
    %223 = vmatprep.mubr.f32.mxu0 0.0
    %224 = vmatmul.mubr.f32.gmra.mrb[0].mxu0 %v130
    %v225 = vpop.f32.mrb[0].mxu0
    %v226 = vadd.f32 %v115, %v225
    %v227 = vpop.f32.mrb[0].mxu0
    %v228 = vadd.f32 %v119, %v227
    %229 = vmatprep.mubr.f32.mxu0 0.0
    %230 = vmatmul.mubr.f32.gmra.mrb[0].mxu0 %v133
    %v231 = vpop.f32.mrb[0].mxu0
    %v232 = vadd.f32 %v115, %v231
    %v233 = vpop.f32.mrb[0].mxu0
    %v234 = vadd.f32 %v119, %v233
    %235 = vmatprep.mubr.f32.mxu0 0.0
    %236 = vmatmul.mubr.f32.gmra.mrb[0].mxu0 %v136
    %v237 = vpop.f32.mrb[0].mxu0
    %v238 = vadd.f32 %v115, %v237
    %v239 = vpop.f32.mrb[0].mxu0
    %v240 = vadd.f32 %v119, %v239
    %241 = vmatprep.mubr.f32.mxu0 0.0
    %242 = vmatmul.mubr.f32.gmra.mrb[0].mxu0 %v139
    %v243 = vpop.f32.mrb[0].mxu0
    %v244 = vadd.f32 %v115, %v243
    %v245 = vpop.f32.mrb[0].mxu0
    %v246 = vadd.f32 %v119, %v245
    %247 = vmatprep.mubr.f32.mxu0 0.0
    %248 = vmatmul.mubr.f32.gmra.mrb[0].mxu0 %v142
    %v249 = vpop.f32.mrb[0].mxu0
    %v250 = vadd.f32 %v115, %v249
    %v251 = vpop.f32.mrb[0].mxu0
    %v252 = vadd.f32 %v119, %v251
    %253 = vmatprep.mubr.f32.mxu0 0.0
    %254 = vmatmul.mubr.f32.gmra.mrb[0].mxu0 %v145
    %v255 = vpop.f32.mrb[0].mxu0
    %v256 = vadd.f32 %v115, %v255
    %v257 = vpop.f32.mrb[0].mxu0
    %v258 = vadd.f32 %v119, %v257
    %259 = vdwg.mxu0
    %260 = vst [vmem:[#allocation2] sm:$0xff] %v214
    %261 = vst [vmem:[#allocation2 + $0x8] sm:$0xff] %v216
    %262 = vst [vmem:[#allocation2 + $0x10] sm:$0xff] %v220
    %263 = vst [vmem:[#allocation2 + $0x18] sm:$0xff] %v222
    %264 = vst [vmem:[#allocation2 + $0x20] sm:$0xff] %v226
    %265 = vst [vmem:[#allocation2 + $0x28] sm:$0xff] %v228
    %266 = vst [vmem:[#allocation2 + $0x30] sm:$0xff] %v232
    %267 = vst [vmem:[#allocation2 + $0x38] sm:$0xff] %v234
    %268 = vst [vmem:[#allocation2 + $0x40] sm:$0xff] %v238
    %269 = vst [vmem:[#allocation2 + $0x48] sm:$0xff] %v240
    %270 = vst [vmem:[#allocation2 + $0x50] sm:$0xff] %v244
    %271 = vst [vmem:[#allocation2 + $0x58] sm:$0xff] %v246
    %272 = vst [vmem:[#allocation2 + $0x60] sm:$0xff] %v250
    %273 = vst [vmem:[#allocation2 + $0x68] sm:$0xff] %v252
    %274 = vst [vmem:[#allocation2 + $0x70] sm:$0xff] %v256
    %275 = vst [vmem:[#allocation2 + $0x78] sm:$0xff] %v258
    %v276 = vld [vmem:[%s1] sm:$0xff]
    %v277 = vld [vmem:[#allocation10] sm:$0xff]
    %v278 = vld [vmem:[#allocation10 + $0x8] sm:$0xff]
    %v279 = vld [vmem:[#allocation10 + $0x10] sm:$0xff]
    %v280 = vld [vmem:[#allocation10 + $0x18] sm:$0xff]
    %v281 = vld [vmem:[#allocation10 + $0x20] sm:$0xff]
    %v282 = vld [vmem:[#allocation10 + $0x28] sm:$0xff]
    %v283 = vld [vmem:[#allocation10 + $0x30] sm:$0xff]
    %v284 = vld [vmem:[#allocation10 + $0x38] sm:$0xff]
    %v285 = vld [vmem:[#allocation10 + $0x40] sm:$0xff]
    %v286 = vld [vmem:[#allocation10 + $0x48] sm:$0xff]
    %v287 = vld [vmem:[#allocation10 + $0x50] sm:$0xff]
    %v288 = vld [vmem:[#allocation10 + $0x58] sm:$0xff]
    %v289 = vld [vmem:[#allocation10 + $0x60] sm:$0xff]
    %v290 = vld [vmem:[#allocation10 + $0x68] sm:$0xff]
    %v291 = vld [vmem:[#allocation10 + $0x70] sm:$0xff]
    %v292 = vld [vmem:[#allocation10 + $0x78] sm:$0xff]
    %v293 = vld [vmem:[#allocation11] sm:$0xff]
    %v294 = vld [vmem:[#allocation11 + $0x8] sm:$0xff]
    %v295 = vld [vmem:[#allocation11 + $0x10] sm:$0xff]
    %v296 = vld [vmem:[#allocation11 + $0x18] sm:$0xff]
    %v297 = vld [vmem:[#allocation11 + $0x20] sm:$0xff]
    %v298 = vld [vmem:[#allocation11 + $0x28] sm:$0xff]
    %v299 = vld [vmem:[#allocation11 + $0x30] sm:$0xff]
    %v300 = vld [vmem:[#allocation11 + $0x38] sm:$0xff]
    %v301 = vld [vmem:[%s7] sm:$0xff]
    %v302 = vld [vmem:[%s7 + $0x8] sm:$0xff]
    %v303 = vld [vmem:[%s7 + $0x10] sm:$0xff]
    %v304 = vld [vmem:[%s7 + $0x18] sm:$0xff]
    %v305 = vld [vmem:[%s8] sm:$0x1]
    %s306 = sld [smem:[#allocation4]]
    // While loop
    $region58: #{tpu_custom_call.1} parent=1 // loop_pre_header
      _
    $region59: #{tpu_custom_call.1} parent=1 // loop_header
      %s308 = sphi 0, %s310
      %p309 = scmp.ge.s32.totalorder %s308, %s306
      %v313 = vphi 0.0, %v430
      %v314 = vphi 0.0, %v431
      %v315 = vphi 0.0, %v613
      %v316 = vphi 0.0, %v614
    $region60: #{tpu_custom_call.1} parent=1 // loop_header_branch
      %312 = sbr.rel (%p309) target = $region64
    $region61: #{tpu_custom_call.1} parent=1 // loop_body
      %v317 = vstv %s308
      %vm318 = vcmp.lt.s32.totalorder %v317, %v276
      %v319 = vsel %vm318, 1, 0
      %320 = vset.pattern.permute.xlu0 0
      %321 = vperm.xlu0 %320, %v319
      %v322 = vpop.permute.xlu0 %321
      %vm323 = vcmp.eq.s32.totalorder %v322, 1
      %s324 = smul.u32 %s308, 2
      %s325 = smul.addr %s324, 8
      %s326 = scalar_lea.vmem [#allocation2], %s325
      %v327 = vld [vmem:[%s326] sm:$0xff]
      %v328 = vld [vmem:[%s326 + $0x8] sm:$0xff]
      %330 = vrot.lane.b32.xlu0 %v313, 64
      %v331 = vpop.permute.xlu0 %330
      %vm332 = vcmask 523264
      %v333 = vsel %vm332, %v331, 0
      %335 = vmatprep.subr.mxu0 %v278
      %336 = vmatpush1.msra.mxu0 %v277
      %337 = vmatprep.subr.mxu0 %v280
      %338 = vmatpush1.msra.mxu0 %v279
      %339 = vmatprep.subr.mxu0 %v282
      %340 = vmatpush1.msra.mxu0 %v281
      %341 = vmatprep.subr.mxu0 %v284
      %342 = vmatpush1.msra.mxu0 %v283
      %343 = vmatprep.subr.mxu0 %v286
      %344 = vmatpush1.msra.mxu0 %v285
      %345 = vmatprep.subr.mxu0 %v288
      %346 = vmatpush1.msra.mxu0 %v287
      %347 = vmatprep.subr.mxu0 %v290
      %348 = vmatpush1.msra.mxu0 %v289
      %349 = vmatprep.subr.mxu0 %v292
      %350 = vmatpush1.msra.mxu0 %v291
      %351 = vmatprep.subr.mxu0 0.0
      %352 = vmatpush1.msra.mxu0 0.0
      %353 = vmatprep.subr.mxu0 0.0
      %354 = vmatpush1.msra.mxu0 0.0
      %355 = vmatprep.subr.mxu0 0.0
      %356 = vmatpush1.msra.mxu0 0.0
      %357 = vmatprep.subr.mxu0 0.0
      %358 = vmatpush1.msra.mxu0 0.0
      %359 = vmatprep.subr.mxu0 0.0
      %360 = vmatpush1.msra.mxu0 0.0
      %361 = vmatprep.subr.mxu0 0.0
      %362 = vmatpush1.msra.mxu0 0.0
      %363 = vmatprep.subr.mxu0 0.0
      %364 = vmatpush1.msra.mxu0 0.0
      %365 = vmatprep.subr.mxu0 0.0
      %366 = vmatpush1.msra.mxu0 0.0
      %367 = vmatprep.subr.mxu0 0.0
      %368 = vmatpush1.msra.mxu0 0.0
      %369 = vmatprep.subr.mxu0 0.0
      %370 = vmatpush1.msra.mxu0 0.0
      %371 = vmatprep.subr.mxu0 0.0
      %372 = vmatpush1.msra.mxu0 0.0
      %373 = vmatprep.subr.mxu0 0.0
      %374 = vmatpush1.msra.mxu0 0.0
      %375 = vmatprep.subr.mxu0 0.0
      %376 = vmatpush1.msra.mxu0 0.0
      %377 = vmatprep.subr.mxu0 0.0
      %378 = vmatpush1.msra.mxu0 0.0
      %379 = vmatprep.subr.mxu0 0.0
      %380 = vmatpush1.msra.mxu0 0.0
      %381 = vmatprep.subr.mxu0 0.0
      %382 = vmatpush1.msra.mxu0 0.0
      %383 = vmatprep.subr.mxu0 0.0
      %384 = vmatpush1.msra.mxu0 0.0
      %385 = vmatprep.subr.mxu0 0.0
      %386 = vmatpush1.msra.mxu0 0.0
      %387 = vmatprep.subr.mxu0 0.0
      %388 = vmatpush1.msra.mxu0 0.0
      %389 = vmatprep.subr.mxu0 0.0
      %390 = vmatpush1.msra.mxu0 0.0
      %391 = vmatprep.subr.mxu0 0.0
      %392 = vmatpush1.msra.mxu0 0.0
      %393 = vmatprep.subr.mxu0 0.0
      %394 = vmatpush1.msra.mxu0 0.0
      %395 = vmatprep.subr.mxu0 0.0
      %396 = vmatpush1.msra.mxu0 0.0
      %397 = vmatprep.subr.mxu0 0.0
      %398 = vmatpush1.msra.mxu0 0.0
      %399 = vmatprep.mubr.f32.mxu0 0.0
      %400 = vmatmul.mubr.f32.gmra.mrb[0].mxu0 %v333
      %v401 = vpop.f32.mrb[0].mxu0
      %v402 = vadd.f32 0.0, %v401
      %v403 = vpop.f32.mrb[0].mxu0
      %v404 = vadd.f32 0.0, %v403
      %405 = vdwg.mxu0
      %v406 = vadd.f32 %v327, %v402
      %v407 = vadd.f32 %v328, %v404
      %v408 = vxor.u32 %v406, 2147483648
      %v409 = vmul.f32 %v408, 1.442695
      %v410 = vpow.pop %v409
      %v411 = vadd.f32 %v410, 1.0
      %v412 = vrcp.pop %v411
      %v413 = vmul.f32 1.0, %v412
      %v414 = vtanh.pop %v407
      %v415 = vxor.u32 %v407, 2147483648
      %v416 = vmul.f32 %v415, 1.442695
      %v417 = vpow.pop %v416
      %v418 = vadd.f32 %v417, 1.0
      %v419 = vrcp.pop %v418
      %v420 = vmul.f32 1.0, %v419
      %v421 = vmul.f32 %v413, %v314
      %v422 = vmul.f32 %v413, %v414
      %424 = vrot.lane.b32.xlu0 %v422, 64
      %v425 = vpop.permute.xlu0 %424
      %v427 = vadd.f32 %v421, %v425
      %v428 = vtanh.pop %v427
      %v429 = vmul.f32 %v420, %v428
      %v430 = vsel %vm323, %v429, %v313
      %v431 = vsel %vm323, %v427, %v314
      %433 = vrot.lane.b32.xlu0 %v315, 32
      %v434 = vpop.permute.xlu0 %433
      %v435 = vsel %vm122, %v434, 0
      %437 = vmatprep.subr.mxu0 0.0
      %438 = vmatpush1.msra.mxu0 %v301
      %439 = vmatprep.subr.mxu0 0.0
      %440 = vmatpush1.msra.mxu0 %v302
      %441 = vmatprep.subr.mxu0 0.0
      %442 = vmatpush1.msra.mxu0 %v303
      %443 = vmatprep.subr.mxu0 0.0
      %444 = vmatpush1.msra.mxu0 %v304
      %445 = vmatprep.subr.mxu0 0.0
      %446 = vmatpush1.msra.mxu0 0.0
      %447 = vmatprep.subr.mxu0 0.0
      %448 = vmatpush1.msra.mxu0 0.0
      %449 = vmatprep.subr.mxu0 0.0
      %450 = vmatpush1.msra.mxu0 0.0
      %451 = vmatprep.subr.mxu0 0.0
      %452 = vmatpush1.msra.mxu0 0.0
      %453 = vmatprep.subr.mxu0 0.0
      %454 = vmatpush1.msra.mxu0 0.0
      %455 = vmatprep.subr.mxu0 0.0
      %456 = vmatpush1.msra.mxu0 0.0
      %457 = vmatprep.subr.mxu0 0.0
      %458 = vmatpush1.msra.mxu0 0.0
      %459 = vmatprep.subr.mxu0 0.0
      %460 = vmatpush1.msra.mxu0 0.0
      %461 = vmatprep.subr.mxu0 0.0
      %462 = vmatpush1.msra.mxu0 0.0
      %463 = vmatprep.subr.mxu0 0.0
      %464 = vmatpush1.msra.mxu0 0.0
      %465 = vmatprep.subr.mxu0 0.0
      %466 = vmatpush1.msra.mxu0 0.0
      %467 = vmatprep.subr.mxu0 0.0
      %468 = vmatpush1.msra.mxu0 0.0
      %469 = vmatprep.subr.mxu0 0.0
      %470 = vmatpush1.msra.mxu0 0.0
      %471 = vmatprep.subr.mxu0 0.0
      %472 = vmatpush1.msra.mxu0 0.0
      %473 = vmatprep.subr.mxu0 0.0
      %474 = vmatpush1.msra.mxu0 0.0
      %475 = vmatprep.subr.mxu0 0.0
      %476 = vmatpush1.msra.mxu0 0.0
      %477 = vmatprep.subr.mxu0 0.0
      %478 = vmatpush1.msra.mxu0 0.0
      %479 = vmatprep.subr.mxu0 0.0
      %480 = vmatpush1.msra.mxu0 0.0
      %481 = vmatprep.subr.mxu0 0.0
      %482 = vmatpush1.msra.mxu0 0.0
      %483 = vmatprep.subr.mxu0 0.0
      %484 = vmatpush1.msra.mxu0 0.0
      %485 = vmatprep.subr.mxu0 0.0
      %486 = vmatpush1.msra.mxu0 0.0
      %487 = vmatprep.subr.mxu0 0.0
      %488 = vmatpush1.msra.mxu0 0.0
      %489 = vmatprep.subr.mxu0 0.0
      %490 = vmatpush1.msra.mxu0 0.0
      %491 = vmatprep.subr.mxu0 0.0
      %492 = vmatpush1.msra.mxu0 0.0
      %493 = vmatprep.subr.mxu0 0.0
      %494 = vmatpush1.msra.mxu0 0.0
      %495 = vmatprep.subr.mxu0 0.0
      %496 = vmatpush1.msra.mxu0 0.0
      %497 = vmatprep.subr.mxu0 0.0
      %498 = vmatpush1.msra.mxu0 0.0
      %499 = vmatprep.subr.mxu0 0.0
      %500 = vmatpush1.msra.mxu0 0.0
      %501 = vmatprep.mubr.f32.mxu0 0.0
      %502 = vmatmul.mubr.f32.gmra.mrb[0].mxu0 %v435
      %v503 = vpop.f32.mrb[0].mxu0
      %v504 = vadd.f32 0.0, %v503
      %v505 = vpop.f32.mrb[0].mxu0
      %506 = vdwg.mxu0
      %508 = vrot.lane.b32.xlu0 %v430, 64
      %v509 = vpop.permute.xlu0 %508
      %v510 = vsel %vm332, %v509, 0
      %512 = vmatprep.subr.mxu0 0.0
      %513 = vmatpush1.msra.mxu0 %v293
      %514 = vmatprep.subr.mxu0 0.0
      %515 = vmatpush1.msra.mxu0 %v294
      %516 = vmatprep.subr.mxu0 0.0
      %517 = vmatpush1.msra.mxu0 %v295
      %518 = vmatprep.subr.mxu0 0.0
      %519 = vmatpush1.msra.mxu0 %v296
      %520 = vmatprep.subr.mxu0 0.0
      %521 = vmatpush1.msra.mxu0 %v297
      %522 = vmatprep.subr.mxu0 0.0
      %523 = vmatpush1.msra.mxu0 %v298
      %524 = vmatprep.subr.mxu0 0.0
      %525 = vmatpush1.msra.mxu0 %v299
      %526 = vmatprep.subr.mxu0 0.0
      %527 = vmatpush1.msra.mxu0 %v300
      %528 = vmatprep.subr.mxu0 0.0
      %529 = vmatpush1.msra.mxu0 0.0
      %530 = vmatprep.subr.mxu0 0.0
      %531 = vmatpush1.msra.mxu0 0.0
      %532 = vmatprep.subr.mxu0 0.0
      %533 = vmatpush1.msra.mxu0 0.0
      %534 = vmatprep.subr.mxu0 0.0
      %535 = vmatpush1.msra.mxu0 0.0
      %536 = vmatprep.subr.mxu0 0.0
      %537 = vmatpush1.msra.mxu0 0.0
      %538 = vmatprep.subr.mxu0 0.0
      %539 = vmatpush1.msra.mxu0 0.0
      %540 = vmatprep.subr.mxu0 0.0
      %541 = vmatpush1.msra.mxu0 0.0
      %542 = vmatprep.subr.mxu0 0.0
      %543 = vmatpush1.msra.mxu0 0.0
      %544 = vmatprep.subr.mxu0 0.0
      %545 = vmatpush1.msra.mxu0 0.0
      %546 = vmatprep.subr.mxu0 0.0
      %547 = vmatpush1.msra.mxu0 0.0
      %548 = vmatprep.subr.mxu0 0.0
      %549 = vmatpush1.msra.mxu0 0.0
      %550 = vmatprep.subr.mxu0 0.0
      %551 = vmatpush1.msra.mxu0 0.0
      %552 = vmatprep.subr.mxu0 0.0
      %553 = vmatpush1.msra.mxu0 0.0
      %554 = vmatprep.subr.mxu0 0.0
      %555 = vmatpush1.msra.mxu0 0.0
      %556 = vmatprep.subr.mxu0 0.0
      %557 = vmatpush1.msra.mxu0 0.0
      %558 = vmatprep.subr.mxu0 0.0
      %559 = vmatpush1.msra.mxu0 0.0
      %560 = vmatprep.subr.mxu0 0.0
      %561 = vmatpush1.msra.mxu0 0.0
      %562 = vmatprep.subr.mxu0 0.0
      %563 = vmatpush1.msra.mxu0 0.0
      %564 = vmatprep.subr.mxu0 0.0
      %565 = vmatpush1.msra.mxu0 0.0
      %566 = vmatprep.subr.mxu0 0.0
      %567 = vmatpush1.msra.mxu0 0.0
      %568 = vmatprep.subr.mxu0 0.0
      %569 = vmatpush1.msra.mxu0 0.0
      %570 = vmatprep.subr.mxu0 0.0
      %571 = vmatpush1.msra.mxu0 0.0
      %572 = vmatprep.subr.mxu0 0.0
      %573 = vmatpush1.msra.mxu0 0.0
      %574 = vmatprep.subr.mxu0 0.0
      %575 = vmatpush1.msra.mxu0 0.0
      %576 = vmatprep.mubr.f32.mxu0 0.0
      %577 = vmatmul.mubr.f32.gmra.mrb[0].mxu0 %v510
      %v578 = vpop.f32.mrb[0].mxu0
      %v579 = vadd.f32 %v504, %v578
      %v580 = vpop.f32.mrb[0].mxu0
      %581 = vdwg.mxu0
      %v583 = vlaneseq
      %v584 = vshrl.u32 %v583, 7
      %v585 = vsub.s32 0, %v584
      %v586 = vrot.slane %v305, %v585
      %v588 = vadd.f32 %v579, %v586
      %v589 = vxor.u32 %v588, 2147483648
      %v590 = vmul.f32 %v589, 1.442695
      %v591 = vpow.pop %v590
      %v592 = vadd.f32 %v591, 1.0
      %v593 = vrcp.pop %v592
      %v594 = vmul.f32 1.0, %v593
      %v595 = vtanh.pop %v588
      %v596 = vmul.f32 %v594, %v316
      %598 = vrot.lane.b32.xlu0 %v595, 64
      %v599 = vpop.permute.xlu0 %598
      %v601 = vmul.f32 %v594, %v599
      %603 = vrot.lane.b32.xlu0 %v601, 32
      %v604 = vpop.permute.xlu0 %603
      %v606 = vadd.f32 %v596, %v604
      %v607 = vtanh.pop %v606
      %609 = vrot.lane.b32.xlu0 %v607, 64
      %v610 = vpop.permute.xlu0 %609
      %v612 = vmul.f32 %v594, %v610
      %v613 = vsel %vm323, %v612, %v315
      %v614 = vsel %vm323, %v606, %v316
    $region62: #{tpu_custom_call.1} parent=1 // loop_footer
      %s310 = sadd.s32 %s308, 1
    $region63: #{tpu_custom_call.1} parent=1 // loop_footer_branch
      %307 = sbr.rel target = $region59
    $region64: #{tpu_custom_call.1} parent=1 // loop_exit
      _
    %v615 = vld [vmem:[%s9] sm:$0x1]
    %v617 = vlaneseq
    %v618 = vshrl.u32 %v617, 7
    %v619 = vsub.s32 0, %v618
    %v620 = vrot.slane %v615, %v619
    %621 = vrot.lane.b32.xlu0 %v620, 96
    %v622 = vpop.permute.xlu0 %621
    %v624 = vmul.f32 %v315, %v622
    %626 = vrot.lane.b32.xlu0 %v624, 32
    %v627 = vpop.permute.xlu0 %626
    %v629 = vsel %vm122, %v627, 0.0
    %630 = vadd.xlane.f32.xlu0 %v629
    %v631 = vpop.xlane.xlu0 %630
    %v632 = vld [vmem:[#allocation5] sm:$0x1]
    %v634 = vlaneseq
    %v635 = vshrl.u32 %v634, 7
    %v636 = vsub.s32 0, %v635
    %v637 = vrot.slane %v632, %v636
    %v639 = vadd.f32 %v631, %v637
    %vm640 = vcmask 7168
    %641 = vst.msk [vmem:[%s11] sm:$0xff] %vm640, %v639
    // Predicated region
    $region65: #{tpu_custom_call.1} parent=1 // pred_check
      _
    $region66: #{tpu_custom_call.1} parent=1 // pred_check_branch
      %643 = sbr.rel (0) target = $region68
    $region67: #{tpu_custom_call.1} parent=1 // pred_region
      _
    $region68: #{tpu_custom_call.1} parent=1 // pred_fallthru
      _
    // Predicated region
    $region69: #{tpu_custom_call.1} parent=1 // pred_check
      _
    $region70: #{tpu_custom_call.1} parent=1 // pred_check_branch
      %645 = sbr.rel (0) target = $region72
    $region71: #{tpu_custom_call.1} parent=1 // pred_region
      _
    $region72: #{tpu_custom_call.1} parent=1 // pred_fallthru
      _
    %646 = vsyncpa [#allocation7], 1
    %647 = vsyncpa [#allocation9], 1
    %648 = vsyncpa [#allocation12], 1

</llo_original>
